<compile_context>
chip_gen: v5e
topology: v5e:2x2
jax: 0.10.0
libtpu: 0.0.40
codegen_flags: <defaults>
</compile_context>

<pallas_src>
import functools

import jax
import jax.numpy as jnp
import numpy as np
from jax.experimental import pallas as pl
from jax.experimental.pallas import tpu as pltpu


def _fused_basic_block_kernel(
    x1_ref, x2_ref, w1_ref, b1_ref, kdw_ref, b2_ref, w3_ref, b3_ref, m_ref,
    o_ref, *, W: int, HWp: int, Nb: int,
):
    """Nb samples per grid step; all activations live only in VMEM (flat H*W layout)."""
    f32 = jnp.float32

    def shift(v, off):
        # s[..., p] = v[..., (p + off) % HWp]   (off is a static Python int)
        s = (-off) % HWp
        return pltpu.roll(v, s, axis=v.ndim - 1) if s else v

    # Per-channel BN shifts (scales were folded into the weights host-side).
    b1 = b1_ref[...]
    b2 = b2_ref[...]
    b3 = b3_ref[...]
    # Depthwise 3x3 weights (bn2 scale folded in), one (cpg, 1) column per tap.
    kdw = kdw_ref[...]
    k = [kdw[:, t:t + 1] for t in range(9)]
    # Zero-padding boundary masks, each (1, HWp), broadcast over channels.
    col_l = m_ref[0:1, :]   # left  neighbor (dw = -1) exists
    col_r = m_ref[1:2, :]   # right neighbor (dw = +1) exists
    row_u = m_ref[2:3, :]   # upper neighbor (dh = -1) exists
    row_d = m_ref[3:4, :]   # lower neighbor (dh = +1) exists

    for n in range(Nb):     # static unroll; Nb is kept small (<= 16)
        # ---- conv1 (1x1, bn1 scale pre-folded) + shift + relu --------------------
        t = jnp.dot(w1_ref[...], x2_ref[n], preferred_element_type=f32)
        t = jnp.maximum(t + b1, 0.0)

        # ---- conv2: depthwise 3x3, stride 1, zero pad 1 (+ bn2 shift) ------------
        # Column pass (2 rolls + 2 mask muls), then row pass (2 rolls + 2 mask muls).
        c_l = shift(t, -1) * col_l          # t[p-1] where a left  neighbor exists
        c_r = shift(t, +1) * col_r          # t[p+1] where a right neighbor exists
        r_u = k[0] * c_l + k[1] * t + k[2] * c_r     # taps of kernel row dh = -1
        r_m = k[3] * c_l + k[4] * t + k[5] * c_r     # taps of kernel row dh =  0
        r_d = k[6] * c_l + k[7] * t + k[8] * c_r     # taps of kernel row dh = +1
        t2 = r_m + shift(r_u, -W) * row_u + shift(r_d, +W) * row_d + b2

        # ---- conv3 (1x1, bn3 scale pre-folded) + shift + relu --------------------
        t3 = jnp.dot(w3_ref[...], t2.astype(w3_ref.dtype),
                     preferred_element_type=f32)
        t3 = jnp.maximum(t3 + b3, 0.0)

        # ---- concat([x1, branch]) + channel shuffle (groups=2), fused via layout --
        # Out block (Nb, cpg, 2*HWp) == (Nb, cpg, 2, HWp):
        #   [..., :HWp]  skip half   -> shuffled channels 2*i
        #   [..., HWp:]  branch out  -> shuffled channels 2*i + 1
        # Both stores start at lane offsets that are multiples of 128 (unmasked vst).
        o_ref[n, :, 0:HWp] = x1_ref[n]
        o_ref[n, :, HWp:2 * HWp] = t3.astype(o_ref.dtype)


def _fold_bn(gamma, beta, mean, var, eps):
    scale = gamma.astype(jnp.float32) / jnp.sqrt(var.astype(jnp.float32) + eps)
    shift = beta.astype(jnp.float32) - mean.astype(jnp.float32) * scale
    return scale, shift


def _boundary_masks(H, W, HWp):
    """(4, HWp) {0,1} masks: left/right/up/down neighbor validity (zero padding)."""
    pos = np.arange(HWp)
    row, col = pos // W, pos % W
    valid = pos < H * W
    m = np.stack([
        (col >= 1) & valid,
        (col <= W - 2) & valid,
        (row >= 1) & valid,
        (row <= H - 2) & valid,
    ]).astype(np.float32)
    return jnp.asarray(m)


def _choose_block_n(N, per_sample_bytes, *, target_step_bytes=3 << 20,
                    max_nb=16, min_steps=4):
    """Largest divisor of N under the per-step slab budget (and unroll cap)."""
    nb = int(max(1, min(max_nb, target_step_bytes // max(per_sample_bytes, 1))))
    if N >= min_steps:
        nb = min(nb, max(1, N // min_steps))   # keep enough steps for megacore + pipelining
    nb = max(1, min(nb, N))
    while N % nb:
        nb -= 1
    return nb


def basic_block_forward(x, params, *, eps=1e-5):
    """Fused ShuffleNetV2 BasicBlock forward. x: (N, C, H, W), split ratio 0.5, groups=2."""
    N, C, H, W = x.shape
    assert C % 2 == 0, "C must be even (split ratio 0.5, shuffle groups 2)"
    cpg = C // 2
    HW = H * W
    HWp = -(-HW // 128) * 128                      # lane-align the flat spatial dim

    x3 = x.reshape(N, C, HW)                       # free reshape (contiguous)
    if HWp != HW:
        # TODO(synk): this pad is one extra HBM pass; only hit for non-128-multiple HW.
        x3 = jnp.pad(x3, ((0, 0), (0, 0), (0, HWp - HW)))

    itemsize = jnp.dtype(x.dtype).itemsize
    Nb = _choose_block_n(N, 4 * cpg * HWp * itemsize)
    grid = (N // Nb,)

    # Fold BN scales into the conv weights; only the shifts go into the kernel.
    sc1, sh1 = _fold_bn(params["bn1_gamma"], params["bn1_beta"],
                        params["bn1_mean"], params["bn1_var"], eps)
    sc2, sh2 = _fold_bn(params["bn2_gamma"], params["bn2_beta"],
                        params["bn2_mean"], params["bn2_var"], eps)
    sc3, sh3 = _fold_bn(params["bn3_gamma"], params["bn3_beta"],
                        params["bn3_mean"], params["bn3_var"], eps)

    # MXU operands stay in the model dtype (bf16 if the model runs bf16, else f32);
    # depthwise weights and BN shifts stay f32 (they run on the VPU).
    mxu_dtype = jnp.bfloat16 if x.dtype == jnp.bfloat16 else jnp.float32
    w1s = (params["conv1_w"].reshape(cpg, cpg).astype(jnp.float32)
           * sc1[:, None]).astype(mxu_dtype)
    w3s = (params["conv3_w"].reshape(cpg, cpg).astype(jnp.float32)
           * sc3[:, None]).astype(mxu_dtype)
    kdws = params["conv2_w"].reshape(cpg, 9).astype(jnp.float32) * sc2[:, None]
    b1 = sh1.reshape(cpg, 1)
    b2 = sh2.reshape(cpg, 1)
    b3 = sh3.reshape(cpg, 1)
    masks = _boundary_masks(H, W, HWp)

    kernel = functools.partial(_fused_basic_block_kernel, W=W, HWp=HWp, Nb=Nb)

    per_n = lambda i: (i, 0, 0)
    full = lambda i: (0, 0)

    step_bytes = Nb * 4 * cpg * HWp * itemsize     # x1 + x2 + (2*HWp) output per step
    vmem_limit = int(min(max(4 * step_bytes + (2 << 20), 8 << 20), 32 << 20))

    cost = pl.CostEstimate(
        flops=N * HW * cpg * (4 * cpg + 26),
        transcendentals=0,
        bytes_accessed=2 * N * C * HW * itemsize + (2 * cpg * cpg + 12 * cpg + 4 * HWp) * 4,
    )

    out = pl.pallas_call(
        kernel,
        out_shape=jax.ShapeDtypeStruct((N, cpg, 2 * HWp), x.dtype),
        grid=grid,
        in_specs=[
            pl.BlockSpec((Nb, cpg, HWp), per_n),                # x, first channel half (skip)
            pl.BlockSpec((Nb, cpg, HWp), lambda i: (i, 1, 0)),  # x, second channel half (branch)
            pl.BlockSpec((cpg, cpg), full),                     # conv1 weight (bn1 scale folded)
            pl.BlockSpec((cpg, 1), full),                       # bn1 shift
            pl.BlockSpec((cpg, 9), full),                       # depthwise weights (bn2 folded)
            pl.BlockSpec((cpg, 1), full),                       # bn2 shift
            pl.BlockSpec((cpg, cpg), full),                     # conv3 weight (bn3 scale folded)
            pl.BlockSpec((cpg, 1), full),                       # bn3 shift
            pl.BlockSpec((4, HWp), full),                       # depthwise boundary masks
        ],
        out_specs=pl.BlockSpec((Nb, cpg, 2 * HWp), per_n),
        compiler_params=pltpu.CompilerParams(
            dimension_semantics=("parallel",),
            vmem_limit_bytes=vmem_limit,
        ),
        cost_estimate=cost,
    )(x3, x3, w1s, b1, kdws, b2, w3s, b3, masks)

    # (N, cpg, 2, HWp)[..., :HW] in row-major IS the shuffled (N, C, H, W):
    # shuffled channel 2*i = skip channel i, shuffled channel 2*i + 1 = branch channel i.
    out = out.reshape(N, cpg, 2, HWp)
    if HWp != HW:
        out = out[..., :HW]
    return out.reshape(N, C, H, W)


def basic_block_ref(x, params, *, eps=1e-5):
    """Pure-JAX reference mirroring the PyTorch BasicBlock forward op-by-op."""
    N, C, H, W = x.shape
    cpg = C // 2
    x1, x2 = x[:, :cpg], x[:, cpg:]
    dn = ("NCHW", "OIHW", "NCHW")
    hp = jax.lax.Precision.HIGHEST

    def bn(y, g, b, m, v):
        return (g[None, :, None, None] * (y - m[None, :, None, None])
                / jnp.sqrt(v[None, :, None, None] + eps) + b[None, :, None, None])

    out = jax.lax.conv_general_dilated(x2, params["conv1_w"], (1, 1), "VALID",
                                       dimension_numbers=dn, precision=hp)
    out = jax.nn.relu(bn(out, params["bn1_gamma"], params["bn1_beta"],
                         params["bn1_mean"], params["bn1_var"]))
    out = jax.lax.conv_general_dilated(out, params["conv2_w"], (1, 1),
                                       ((1, 1), (1, 1)), dimension_numbers=dn,
                                       feature_group_count=cpg, precision=hp)
    out = bn(out, params["bn2_gamma"], params["bn2_beta"],
             params["bn2_mean"], params["bn2_var"])
    out = jax.lax.conv_general_dilated(out, params["conv3_w"], (1, 1), "VALID",
                                       dimension_numbers=dn, precision=hp)
    out = jax.nn.relu(bn(out, params["bn3_gamma"], params["bn3_beta"],
                         params["bn3_mean"], params["bn3_var"]))
    out = jnp.concatenate([x1, out], axis=1)
    g = 2  # ShuffleBlock(groups=2)
    out = out.reshape(N, g, C // g, H, W).transpose(0, 2, 1, 3, 4).reshape(N, C, H, W)
    return out


if __name__ == "__main__":
    N, C, H, W = 2, 16, 16, 16   # small; cpg=8, HW=256 (multiple of 128)
    cpg = C // 2
    key = jax.random.PRNGKey(0)
    ks = jax.random.split(key, 16)

    def _bf16_snap(a):
        # Keep test values bf16-representable so MXU precision/pass choices perturb
        # the kernel-vs-reference comparison as little as possible.
        return a.astype(jnp.bfloat16).astype(jnp.float32)

    x = _bf16_snap(jax.random.normal(ks[0], (N, C, H, W), jnp.float32))
    params = {
        "conv1_w": _bf16_snap(0.5 * jax.random.normal(ks[1], (cpg, cpg, 1, 1), jnp.float32)),
        "conv2_w": _bf16_snap(0.4 * jax.random.normal(ks[2], (cpg, 1, 3, 3), jnp.float32)),
        "conv3_w": _bf16_snap(0.5 * jax.random.normal(ks[3], (cpg, cpg, 1, 1), jnp.float32)),
        "bn1_gamma": 1.0 + 0.1 * jax.random.normal(ks[4], (cpg,), jnp.float32),
        "bn1_beta": 0.1 * jax.random.normal(ks[5], (cpg,), jnp.float32),
        "bn1_mean": 0.1 * jax.random.normal(ks[6], (cpg,), jnp.float32),
        "bn1_var": 1.0 + 0.1 * jnp.abs(jax.random.normal(ks[7], (cpg,), jnp.float32)),
        "bn2_gamma": 1.0 + 0.1 * jax.random.normal(ks[8], (cpg,), jnp.float32),
        "bn2_beta": 0.1 * jax.random.normal(ks[9], (cpg,), jnp.float32),
        "bn2_mean": 0.1 * jax.random.normal(ks[10], (cpg,), jnp.float32),
        "bn2_var": 1.0 + 0.1 * jnp.abs(jax.random.normal(ks[11], (cpg,), jnp.float32)),
        "bn3_gamma": 1.0 + 0.1 * jax.random.normal(ks[12], (cpg,), jnp.float32),
        "bn3_beta": 0.1 * jax.random.normal(ks[13], (cpg,), jnp.float32),
        "bn3_mean": 0.1 * jax.random.normal(ks[14], (cpg,), jnp.float32),
        "bn3_var": 1.0 + 0.1 * jnp.abs(jax.random.normal(ks[15], (cpg,), jnp.float32)),
    }

    out = jax.block_until_ready(basic_block_forward(x, params))
    ref = basic_block_ref(x, params)

    assert out.shape == (N, C, H, W) and out.dtype == x.dtype
    # The skip half passes through concat+shuffle untouched -> even shuffled channels
    # must be bit-exact copies of x1.
    assert jnp.array_equal(out[:, 0::2], x[:, :cpg]), "skip channels not bit-exact"
    max_err = float(jnp.max(jnp.abs(out - ref)))
    assert max_err < 5e-2, f"kernel vs reference max abs error too large: {max_err}"
    print("KERNEL_OK")
</pallas_src>

<mosaic_0001>
module attributes {stable_mosaic.version = 11 : i64} {
  func.func @_fused_basic_block_kernel(%arg0: i32, %arg1: memref<2x8x256xf32, #tpu.memory_space<vmem>>, %arg2: memref<2x8x256xf32, #tpu.memory_space<vmem>>, %arg3: memref<8x8xf32, #tpu.memory_space<vmem>>, %arg4: memref<8x1xf32, #tpu.memory_space<vmem>>, %arg5: memref<8x9xf32, #tpu.memory_space<vmem>>, %arg6: memref<8x1xf32, #tpu.memory_space<vmem>>, %arg7: memref<8x8xf32, #tpu.memory_space<vmem>>, %arg8: memref<8x1xf32, #tpu.memory_space<vmem>>, %arg9: memref<4x256xf32, #tpu.memory_space<vmem>>, %arg10: memref<2x8x512xf32, #tpu.memory_space<vmem>>) attributes {dimension_semantics = [#tpu.dimension_semantics<parallel>], iteration_bounds = array<i64: 1>, scalar_prefetch = 0 : i64, scratch_operands = 0 : i64, tpu.core_type = #tpu.core_type<tc>, window_params = [{transform_indices = @transform_0, window_bounds = array<i64: 2, 8, 256>}, {transform_indices = @transform_1, window_bounds = array<i64: 2, 8, 256>}, {pipeline_mode = #tpu.pipeline_mode<synchronous>, transform_indices = @transform_2, window_bounds = array<i64: 8, 8>}, {pipeline_mode = #tpu.pipeline_mode<synchronous>, transform_indices = @transform_3, window_bounds = array<i64: 8, 1>}, {pipeline_mode = #tpu.pipeline_mode<synchronous>, transform_indices = @transform_4, window_bounds = array<i64: 8, 9>}, {pipeline_mode = #tpu.pipeline_mode<synchronous>, transform_indices = @transform_5, window_bounds = array<i64: 8, 1>}, {pipeline_mode = #tpu.pipeline_mode<synchronous>, transform_indices = @transform_6, window_bounds = array<i64: 8, 8>}, {pipeline_mode = #tpu.pipeline_mode<synchronous>, transform_indices = @transform_7, window_bounds = array<i64: 8, 1>}, {pipeline_mode = #tpu.pipeline_mode<synchronous>, transform_indices = @transform_8, window_bounds = array<i64: 4, 256>}, {transform_indices = @transform_9, window_bounds = array<i64: 2, 8, 512>}]} {
    %c0 = arith.constant 0 : index
    %c0_0 = arith.constant 0 : index
    %0 = vector.load %arg4[%c0, %c0_0] : memref<8x1xf32, #tpu.memory_space<vmem>>, vector<8x1xf32>
    %c0_1 = arith.constant 0 : index
    %c0_2 = arith.constant 0 : index
    %1 = vector.load %arg6[%c0_1, %c0_2] : memref<8x1xf32, #tpu.memory_space<vmem>>, vector<8x1xf32>
    %c0_3 = arith.constant 0 : index
    %c0_4 = arith.constant 0 : index
    %2 = vector.load %arg8[%c0_3, %c0_4] : memref<8x1xf32, #tpu.memory_space<vmem>>, vector<8x1xf32>
    %c0_5 = arith.constant 0 : index
    %c0_6 = arith.constant 0 : index
    %3 = vector.load %arg5[%c0_5, %c0_6] : memref<8x9xf32, #tpu.memory_space<vmem>>, vector<8x9xf32>
    %4 = vector.extract_strided_slice %3 {offsets = [0, 0], sizes = [8, 1], strides = [1, 1]} : vector<8x9xf32> to vector<8x1xf32>
    %5 = vector.extract_strided_slice %3 {offsets = [0, 1], sizes = [8, 1], strides = [1, 1]} : vector<8x9xf32> to vector<8x1xf32>
    %6 = vector.extract_strided_slice %3 {offsets = [0, 2], sizes = [8, 1], strides = [1, 1]} : vector<8x9xf32> to vector<8x1xf32>
    %7 = vector.extract_strided_slice %3 {offsets = [0, 3], sizes = [8, 1], strides = [1, 1]} : vector<8x9xf32> to vector<8x1xf32>
    %8 = vector.extract_strided_slice %3 {offsets = [0, 4], sizes = [8, 1], strides = [1, 1]} : vector<8x9xf32> to vector<8x1xf32>
    %9 = vector.extract_strided_slice %3 {offsets = [0, 5], sizes = [8, 1], strides = [1, 1]} : vector<8x9xf32> to vector<8x1xf32>
    %10 = vector.extract_strided_slice %3 {offsets = [0, 6], sizes = [8, 1], strides = [1, 1]} : vector<8x9xf32> to vector<8x1xf32>
    %11 = vector.extract_strided_slice %3 {offsets = [0, 7], sizes = [8, 1], strides = [1, 1]} : vector<8x9xf32> to vector<8x1xf32>
    %12 = vector.extract_strided_slice %3 {offsets = [0, 8], sizes = [8, 1], strides = [1, 1]} : vector<8x9xf32> to vector<8x1xf32>
    %c0_7 = arith.constant 0 : index
    %c0_8 = arith.constant 0 : index
    %13 = vector.load %arg9[%c0_7, %c0_8] : memref<4x256xf32, #tpu.memory_space<vmem>>, vector<1x256xf32>
    %c1 = arith.constant 1 : index
    %c0_9 = arith.constant 0 : index
    %14 = vector.load %arg9[%c1, %c0_9] : memref<4x256xf32, #tpu.memory_space<vmem>>, vector<1x256xf32>
    %c2 = arith.constant 2 : index
    %c0_10 = arith.constant 0 : index
    %15 = vector.load %arg9[%c2, %c0_10] : memref<4x256xf32, #tpu.memory_space<vmem>>, vector<1x256xf32>
    %c3 = arith.constant 3 : index
    %c0_11 = arith.constant 0 : index
    %16 = vector.load %arg9[%c3, %c0_11] : memref<4x256xf32, #tpu.memory_space<vmem>>, vector<1x256xf32>
    %c0_12 = arith.constant 0 : index
    %c0_13 = arith.constant 0 : index
    %17 = vector.load %arg3[%c0_12, %c0_13] : memref<8x8xf32, #tpu.memory_space<vmem>>, vector<8x8xf32>
    %c0_14 = arith.constant 0 : index
    %c0_15 = arith.constant 0 : index
    %c0_16 = arith.constant 0 : index
    %18 = vector.load %arg2[%c0_14, %c0_15, %c0_16] : memref<2x8x256xf32, #tpu.memory_space<vmem>>, vector<1x8x256xf32>
    %19 = vector.shape_cast %18 : vector<1x8x256xf32> to vector<8x256xf32>
    %cst = arith.constant dense<0.000000e+00> : vector<8x256xf32>
    %20 = tpu.matmul %17, %19, %cst {dimension_numbers = #tpu.dot_dimension_numbers<[1], [0], [0], [1], [0, 0, 1, 1], [], []>} : vector<8x8xf32>, vector<8x256xf32>, vector<8x256xf32> -> vector<8x256xf32>
    %21 = vector.broadcast %0 : vector<8x1xf32> to vector<8x256xf32>
    %22 = arith.addf %20, %21 : vector<8x256xf32>
    %cst_17 = arith.constant 0.000000e+00 : f32
    %23 = vector.broadcast %cst_17 : f32 to vector<8x256xf32>
    %24 = arith.maximumf %22, %23 : vector<8x256xf32>
    %c1_i32 = arith.constant 1 : i32
    %25 = tpu.dynamic_rotate %24 by %c1_i32 dim 1 : vector<8x256xf32>, i32 -> vector<8x256xf32>
    %26 = vector.broadcast %13 : vector<1x256xf32> to vector<8x256xf32>
    %27 = arith.mulf %25, %26 : vector<8x256xf32>
    %c255_i32 = arith.constant 255 : i32
    %28 = tpu.dynamic_rotate %24 by %c255_i32 dim 1 : vector<8x256xf32>, i32 -> vector<8x256xf32>
    %29 = vector.broadcast %14 : vector<1x256xf32> to vector<8x256xf32>
    %30 = arith.mulf %28, %29 : vector<8x256xf32>
    %31 = vector.broadcast %4 : vector<8x1xf32> to vector<8x256xf32>
    %32 = arith.mulf %31, %27 : vector<8x256xf32>
    %33 = vector.broadcast %5 : vector<8x1xf32> to vector<8x256xf32>
    %34 = arith.mulf %33, %24 : vector<8x256xf32>
    %35 = arith.addf %32, %34 : vector<8x256xf32>
    %36 = vector.broadcast %6 : vector<8x1xf32> to vector<8x256xf32>
    %37 = arith.mulf %36, %30 : vector<8x256xf32>
    %38 = arith.addf %35, %37 : vector<8x256xf32>
    %39 = vector.broadcast %7 : vector<8x1xf32> to vector<8x256xf32>
    %40 = arith.mulf %39, %27 : vector<8x256xf32>
    %41 = vector.broadcast %8 : vector<8x1xf32> to vector<8x256xf32>
    %42 = arith.mulf %41, %24 : vector<8x256xf32>
    %43 = arith.addf %40, %42 : vector<8x256xf32>
    %44 = vector.broadcast %9 : vector<8x1xf32> to vector<8x256xf32>
    %45 = arith.mulf %44, %30 : vector<8x256xf32>
    %46 = arith.addf %43, %45 : vector<8x256xf32>
    %47 = vector.broadcast %10 : vector<8x1xf32> to vector<8x256xf32>
    %48 = arith.mulf %47, %27 : vector<8x256xf32>
    %49 = vector.broadcast %11 : vector<8x1xf32> to vector<8x256xf32>
    %50 = arith.mulf %49, %24 : vector<8x256xf32>
    %51 = arith.addf %48, %50 : vector<8x256xf32>
    %52 = vector.broadcast %12 : vector<8x1xf32> to vector<8x256xf32>
    %53 = arith.mulf %52, %30 : vector<8x256xf32>
    %54 = arith.addf %51, %53 : vector<8x256xf32>
    %c16_i32 = arith.constant 16 : i32
    %55 = tpu.dynamic_rotate %38 by %c16_i32 dim 1 : vector<8x256xf32>, i32 -> vector<8x256xf32>
    %56 = vector.broadcast %15 : vector<1x256xf32> to vector<8x256xf32>
    %57 = arith.mulf %55, %56 : vector<8x256xf32>
    %58 = arith.addf %46, %57 : vector<8x256xf32>
    %c240_i32 = arith.constant 240 : i32
    %59 = tpu.dynamic_rotate %54 by %c240_i32 dim 1 : vector<8x256xf32>, i32 -> vector<8x256xf32>
    %60 = vector.broadcast %16 : vector<1x256xf32> to vector<8x256xf32>
    %61 = arith.mulf %59, %60 : vector<8x256xf32>
    %62 = arith.addf %58, %61 : vector<8x256xf32>
    %63 = vector.broadcast %1 : vector<8x1xf32> to vector<8x256xf32>
    %64 = arith.addf %62, %63 : vector<8x256xf32>
    %c0_18 = arith.constant 0 : index
    %c0_19 = arith.constant 0 : index
    %65 = vector.load %arg7[%c0_18, %c0_19] : memref<8x8xf32, #tpu.memory_space<vmem>>, vector<8x8xf32>
    %cst_20 = arith.constant dense<0.000000e+00> : vector<8x256xf32>
    %66 = tpu.matmul %65, %64, %cst_20 {dimension_numbers = #tpu.dot_dimension_numbers<[1], [0], [0], [1], [0, 0, 1, 1], [], []>} : vector<8x8xf32>, vector<8x256xf32>, vector<8x256xf32> -> vector<8x256xf32>
    %67 = vector.broadcast %2 : vector<8x1xf32> to vector<8x256xf32>
    %68 = arith.addf %66, %67 : vector<8x256xf32>
    %cst_21 = arith.constant 0.000000e+00 : f32
    %69 = vector.broadcast %cst_21 : f32 to vector<8x256xf32>
    %70 = arith.maximumf %68, %69 : vector<8x256xf32>
    %c0_22 = arith.constant 0 : index
    %c0_23 = arith.constant 0 : index
    %c0_24 = arith.constant 0 : index
    %71 = vector.load %arg1[%c0_22, %c0_23, %c0_24] : memref<2x8x256xf32, #tpu.memory_space<vmem>>, vector<1x8x256xf32>
    %72 = vector.shape_cast %71 : vector<1x8x256xf32> to vector<8x256xf32>
    %c0_25 = arith.constant 0 : index
    %c0_26 = arith.constant 0 : index
    %c0_27 = arith.constant 0 : index
    %73 = vector.load %arg10[%c0_25, %c0_26, %c0_27] : memref<2x8x512xf32, #tpu.memory_space<vmem>>, vector<1x8x256xf32>
    %74 = vector.shape_cast %73 : vector<1x8x256xf32> to vector<8x256xf32>
    %75 = vector.shape_cast %72 : vector<8x256xf32> to vector<1x8x256xf32>
    tpu.vector_store %arg10[%c0_25, %c0_26, %c0_27], %75 {strides = array<i32>} : memref<2x8x512xf32, #tpu.memory_space<vmem>>, vector<1x8x256xf32>,
    %c0_28 = arith.constant 0 : index
    %c0_29 = arith.constant 0 : index
    %c256 = arith.constant 256 : index
    %76 = vector.load %arg10[%c0_28, %c0_29, %c256] : memref<2x8x512xf32, #tpu.memory_space<vmem>>, vector<1x8x256xf32>
    %77 = vector.shape_cast %76 : vector<1x8x256xf32> to vector<8x256xf32>
    %78 = vector.shape_cast %70 : vector<8x256xf32> to vector<1x8x256xf32>
    tpu.vector_store %arg10[%c0_28, %c0_29, %c256], %78 {strides = array<i32>} : memref<2x8x512xf32, #tpu.memory_space<vmem>>, vector<1x8x256xf32>,
    %c0_30 = arith.constant 0 : index
    %c0_31 = arith.constant 0 : index
    %79 = vector.load %arg3[%c0_30, %c0_31] : memref<8x8xf32, #tpu.memory_space<vmem>>, vector<8x8xf32>
    %c1_32 = arith.constant 1 : index
    %c0_33 = arith.constant 0 : index
    %c0_34 = arith.constant 0 : index
    %80 = vector.load %arg2[%c1_32, %c0_33, %c0_34] : memref<2x8x256xf32, #tpu.memory_space<vmem>>, vector<1x8x256xf32>
    %81 = vector.shape_cast %80 : vector<1x8x256xf32> to vector<8x256xf32>
    %cst_35 = arith.constant dense<0.000000e+00> : vector<8x256xf32>
    %82 = tpu.matmul %79, %81, %cst_35 {dimension_numbers = #tpu.dot_dimension_numbers<[1], [0], [0], [1], [0, 0, 1, 1], [], []>} : vector<8x8xf32>, vector<8x256xf32>, vector<8x256xf32> -> vector<8x256xf32>
    %83 = vector.broadcast %0 : vector<8x1xf32> to vector<8x256xf32>
    %84 = arith.addf %82, %83 : vector<8x256xf32>
    %cst_36 = arith.constant 0.000000e+00 : f32
    %85 = vector.broadcast %cst_36 : f32 to vector<8x256xf32>
    %86 = arith.maximumf %84, %85 : vector<8x256xf32>
    %c1_i32_37 = arith.constant 1 : i32
    %87 = tpu.dynamic_rotate %86 by %c1_i32_37 dim 1 : vector<8x256xf32>, i32 -> vector<8x256xf32>
    %88 = vector.broadcast %13 : vector<1x256xf32> to vector<8x256xf32>
    %89 = arith.mulf %87, %88 : vector<8x256xf32>
    %c255_i32_38 = arith.constant 255 : i32
    %90 = tpu.dynamic_rotate %86 by %c255_i32_38 dim 1 : vector<8x256xf32>, i32 -> vector<8x256xf32>
    %91 = vector.broadcast %14 : vector<1x256xf32> to vector<8x256xf32>
    %92 = arith.mulf %90, %91 : vector<8x256xf32>
    %93 = vector.broadcast %4 : vector<8x1xf32> to vector<8x256xf32>
    %94 = arith.mulf %93, %89 : vector<8x256xf32>
    %95 = vector.broadcast %5 : vector<8x1xf32> to vector<8x256xf32>
    %96 = arith.mulf %95, %86 : vector<8x256xf32>
    %97 = arith.addf %94, %96 : vector<8x256xf32>
    %98 = vector.broadcast %6 : vector<8x1xf32> to vector<8x256xf32>
    %99 = arith.mulf %98, %92 : vector<8x256xf32>
    %100 = arith.addf %97, %99 : vector<8x256xf32>
    %101 = vector.broadcast %7 : vector<8x1xf32> to vector<8x256xf32>
    %102 = arith.mulf %101, %89 : vector<8x256xf32>
    %103 = vector.broadcast %8 : vector<8x1xf32> to vector<8x256xf32>
    %104 = arith.mulf %103, %86 : vector<8x256xf32>
    %105 = arith.addf %102, %104 : vector<8x256xf32>
    %106 = vector.broadcast %9 : vector<8x1xf32> to vector<8x256xf32>
    %107 = arith.mulf %106, %92 : vector<8x256xf32>
    %108 = arith.addf %105, %107 : vector<8x256xf32>
    %109 = vector.broadcast %10 : vector<8x1xf32> to vector<8x256xf32>
    %110 = arith.mulf %109, %89 : vector<8x256xf32>
    %111 = vector.broadcast %11 : vector<8x1xf32> to vector<8x256xf32>
    %112 = arith.mulf %111, %86 : vector<8x256xf32>
    %113 = arith.addf %110, %112 : vector<8x256xf32>
    %114 = vector.broadcast %12 : vector<8x1xf32> to vector<8x256xf32>
    %115 = arith.mulf %114, %92 : vector<8x256xf32>
    %116 = arith.addf %113, %115 : vector<8x256xf32>
    %c16_i32_39 = arith.constant 16 : i32
    %117 = tpu.dynamic_rotate %100 by %c16_i32_39 dim 1 : vector<8x256xf32>, i32 -> vector<8x256xf32>
    %118 = vector.broadcast %15 : vector<1x256xf32> to vector<8x256xf32>
    %119 = arith.mulf %117, %118 : vector<8x256xf32>
    %120 = arith.addf %108, %119 : vector<8x256xf32>
    %c240_i32_40 = arith.constant 240 : i32
    %121 = tpu.dynamic_rotate %116 by %c240_i32_40 dim 1 : vector<8x256xf32>, i32 -> vector<8x256xf32>
    %122 = vector.broadcast %16 : vector<1x256xf32> to vector<8x256xf32>
    %123 = arith.mulf %121, %122 : vector<8x256xf32>
    %124 = arith.addf %120, %123 : vector<8x256xf32>
    %125 = vector.broadcast %1 : vector<8x1xf32> to vector<8x256xf32>
    %126 = arith.addf %124, %125 : vector<8x256xf32>
    %c0_41 = arith.constant 0 : index
    %c0_42 = arith.constant 0 : index
    %127 = vector.load %arg7[%c0_41, %c0_42] : memref<8x8xf32, #tpu.memory_space<vmem>>, vector<8x8xf32>
    %cst_43 = arith.constant dense<0.000000e+00> : vector<8x256xf32>
    %128 = tpu.matmul %127, %126, %cst_43 {dimension_numbers = #tpu.dot_dimension_numbers<[1], [0], [0], [1], [0, 0, 1, 1], [], []>} : vector<8x8xf32>, vector<8x256xf32>, vector<8x256xf32> -> vector<8x256xf32>
    %129 = vector.broadcast %2 : vector<8x1xf32> to vector<8x256xf32>
    %130 = arith.addf %128, %129 : vector<8x256xf32>
    %cst_44 = arith.constant 0.000000e+00 : f32
    %131 = vector.broadcast %cst_44 : f32 to vector<8x256xf32>
    %132 = arith.maximumf %130, %131 : vector<8x256xf32>
    %c1_45 = arith.constant 1 : index
    %c0_46 = arith.constant 0 : index
    %c0_47 = arith.constant 0 : index
    %133 = vector.load %arg1[%c1_45, %c0_46, %c0_47] : memref<2x8x256xf32, #tpu.memory_space<vmem>>, vector<1x8x256xf32>
    %134 = vector.shape_cast %133 : vector<1x8x256xf32> to vector<8x256xf32>
    %c1_48 = arith.constant 1 : index
    %c0_49 = arith.constant 0 : index
    %c0_50 = arith.constant 0 : index
    %135 = vector.load %arg10[%c1_48, %c0_49, %c0_50] : memref<2x8x512xf32, #tpu.memory_space<vmem>>, vector<1x8x256xf32>
    %136 = vector.shape_cast %135 : vector<1x8x256xf32> to vector<8x256xf32>
    %137 = vector.shape_cast %134 : vector<8x256xf32> to vector<1x8x256xf32>
    tpu.vector_store %arg10[%c1_48, %c0_49, %c0_50], %137 {strides = array<i32>} : memref<2x8x512xf32, #tpu.memory_space<vmem>>, vector<1x8x256xf32>,
    %c1_51 = arith.constant 1 : index
    %c0_52 = arith.constant 0 : index
    %c256_53 = arith.constant 256 : index
    %138 = vector.load %arg10[%c1_51, %c0_52, %c256_53] : memref<2x8x512xf32, #tpu.memory_space<vmem>>, vector<1x8x256xf32>
    %139 = vector.shape_cast %138 : vector<1x8x256xf32> to vector<8x256xf32>
    %140 = vector.shape_cast %132 : vector<8x256xf32> to vector<1x8x256xf32>
    tpu.vector_store %arg10[%c1_51, %c0_52, %c256_53], %140 {strides = array<i32>} : memref<2x8x512xf32, #tpu.memory_space<vmem>>, vector<1x8x256xf32>,
    return
  }
  func.func @transform_0(%arg0: i32) -> (i32, i32, i32) {
    %c0_i32 = arith.constant 0 : i32
    %c0_i32_0 = arith.constant 0 : i32
    %c0_i32_1 = arith.constant 0 : i32
    return %arg0, %c0_i32, %c0_i32_0 : i32, i32, i32
  }
  func.func @transform_1(%arg0: i32) -> (i32, i32, i32) {
    %c1_i32 = arith.constant 1 : i32
    %c0_i32 = arith.constant 0 : i32
    %c0_i32_0 = arith.constant 0 : i32
    return %arg0, %c1_i32, %c0_i32 : i32, i32, i32
  }
  func.func @transform_2(%arg0: i32) -> (i32, i32) {
    %c0_i32 = arith.constant 0 : i32
    %c0_i32_0 = arith.constant 0 : i32
    %c0_i32_1 = arith.constant 0 : i32
    return %c0_i32, %c0_i32_0 : i32, i32
  }
  func.func @transform_3(%arg0: i32) -> (i32, i32) {
    %c0_i32 = arith.constant 0 : i32
    %c0_i32_0 = arith.constant 0 : i32
    %c0_i32_1 = arith.constant 0 : i32
    return %c0_i32, %c0_i32_0 : i32, i32
  }
  func.func @transform_4(%arg0: i32) -> (i32, i32) {
    %c0_i32 = arith.constant 0 : i32
    %c0_i32_0 = arith.constant 0 : i32
    %c0_i32_1 = arith.constant 0 : i32
    return %c0_i32, %c0_i32_0 : i32, i32
  }
  func.func @transform_5(%arg0: i32) -> (i32, i32) {
    %c0_i32 = arith.constant 0 : i32
    %c0_i32_0 = arith.constant 0 : i32
    %c0_i32_1 = arith.constant 0 : i32
    return %c0_i32, %c0_i32_0 : i32, i32
  }
  func.func @transform_6(%arg0: i32) -> (i32, i32) {
    %c0_i32 = arith.constant 0 : i32
    %c0_i32_0 = arith.constant 0 : i32
    %c0_i32_1 = arith.constant 0 : i32
    return %c0_i32, %c0_i32_0 : i32, i32
  }
  func.func @transform_7(%arg0: i32) -> (i32, i32) {
    %c0_i32 = arith.constant 0 : i32
    %c0_i32_0 = arith.constant 0 : i32
    %c0_i32_1 = arith.constant 0 : i32
    return %c0_i32, %c0_i32_0 : i32, i32
  }
  func.func @transform_8(%arg0: i32) -> (i32, i32) {
    %c0_i32 = arith.constant 0 : i32
    %c0_i32_0 = arith.constant 0 : i32
    %c0_i32_1 = arith.constant 0 : i32
    return %c0_i32, %c0_i32_0 : i32, i32
  }
  func.func @transform_9(%arg0: i32) -> (i32, i32, i32) {
    %c0_i32 = arith.constant 0 : i32
    %c0_i32_0 = arith.constant 0 : i32
    %c0_i32_1 = arith.constant 0 : i32
    return %arg0, %c0_i32, %c0_i32_0 : i32, i32, i32
  }
}

</mosaic_0001>

<llo_original>
// kernel: tpu_custom_call.1
$region0: #{tpu_custom_call.1}
  #allocation0 [shape = 'u32[]', space=smem, size = 0x4, offset = 0x4, fixed_abs, tag = 'smem constant byte address 0x4 - core index']
  #allocation1 [shape = 'u32[72,128]{1,0:T(1,128)}', space=vmem, size = 0x9000, scoped, tag = 'internal scratch']
  %s0 = inlined_call_operand.hbm [shape: f32[2,16,256], index: 0, kind: input, shape index: {}]
  %s1 = inlined_call_operand.hbm [shape: f32[2,16,256], index: 1, kind: input, shape index: {}]
  %s2 = inlined_call_operand.vmem [shape: f32[8,8], index: 2, kind: input, shape index: {}]
  %s3 = inlined_call_operand.vmem [shape: f32[8,1], index: 3, kind: input, shape index: {}]
  %s4 = inlined_call_operand.vmem [shape: f32[8,9], index: 4, kind: input, shape index: {}]
  %s5 = inlined_call_operand.vmem [shape: f32[8,1], index: 5, kind: input, shape index: {}]
  %s6 = inlined_call_operand.vmem [shape: f32[8,8], index: 6, kind: input, shape index: {}]
  %s7 = inlined_call_operand.vmem [shape: f32[8,1], index: 7, kind: input, shape index: {}]
  %s8 = inlined_call_operand.vmem [shape: f32[4,256], index: 8, kind: input, shape index: {}]
  %s9 = inlined_call_operand.hbm [shape: f32[2,8,512], index: 9, kind: output, shape index: {}]
  %s10 = sld [smem:[#allocation0]]
  $region54: #{tpu_custom_call.1} parent=0
    _
  %s12 = ssub.s32 1, %s10
  %s13 = scalar_select 0, %s12, %s10
  $region1: #{tpu_custom_call.1} parent=0
    #allocation2 [shape = 'u8[16384]{0}', space=vmem, size = 0x4000, scoped, tag = 'input window, operand 0, single buffered']
    #allocation3 [shape = 's32[1]{0}', space=sflag, size = 0x4, scoped, tag = 'scoped memory for tpu_custom_call.1']
    #allocation4 [shape = 's32[1]{0}', space=sflag, size = 0x4, scoped, tag = 'scoped memory for tpu_custom_call.1']
    #allocation5 [shape = 'u8[16384]{0}', space=vmem, size = 0x4000, scoped, tag = 'input window, operand 1, single buffered']
    #allocation6 [shape = 's32[1]{0}', space=sflag, size = 0x4, scoped, tag = 'scoped memory for tpu_custom_call.1']
    #allocation7 [shape = 'u8[32768]{0}', space=vmem, size = 0x8000, scoped, tag = 'output window, operand 0, single buffered']
    %14 = vsyncpa [#allocation3], 0
    %15 = vsyncpa [#allocation6], 0
    %16 = vsyncpa [#allocation4], 0
    // Predicated region
    $region2: #{tpu_custom_call.1} parent=1 // pred_check
      _
    $region3: #{tpu_custom_call.1} parent=1 // pred_check_branch
      %18 = sbr.rel (0) target = $region5
    $region4: #{tpu_custom_call.1} parent=1 // pred_region
      %20 = vsyncadd [#allocation3], 0
      %s21 = sshll.u32 %s0, 4
      %s22 = int_to_ptr.hbm [resolvable:$true] %s21
      %s23 = sshll.u32 [#allocation2], 4
      %s24 = int_to_ptr.vmem [resolvable:$true] %s23
      %29 = dma.hbm_to_vmem [thread:$0]  %s22, 512, %s24, [#allocation3], 512, 256, 16
    $region5: #{tpu_custom_call.1} parent=1 // pred_fallthru
      _
    // Predicated region
    $region6: #{tpu_custom_call.1} parent=1 // pred_check
      _
    $region7: #{tpu_custom_call.1} parent=1 // pred_check_branch
      %31 = sbr.rel (0) target = $region9
    $region8: #{tpu_custom_call.1} parent=1 // pred_region
      %33 = vsyncadd [#allocation6], 0
      %s34 = scalar_lea.hbm %s1, 16
      %s35 = sshll.u32 %s34, 4
      %s36 = int_to_ptr.hbm [resolvable:$true] %s35
      %s37 = sshll.u32 [#allocation5], 4
      %s38 = int_to_ptr.vmem [resolvable:$true] %s37
      %43 = dma.hbm_to_vmem [thread:$0]  %s36, 512, %s38, [#allocation6], 512, 256, 16
    $region9: #{tpu_custom_call.1} parent=1 // pred_fallthru
      _
    // Predicated region
    $region10: #{tpu_custom_call.1} parent=1 // pred_check
      _
    $region11: #{tpu_custom_call.1} parent=1 // pred_check_branch
      %45 = sbr.rel (0) target = $region13
    $region12: #{tpu_custom_call.1} parent=1 // pred_region
      _
    $region13: #{tpu_custom_call.1} parent=1 // pred_fallthru
      _
    // Predicated region
    $region14: #{tpu_custom_call.1} parent=1 // pred_check
      _
    $region15: #{tpu_custom_call.1} parent=1 // pred_check_branch
      %47 = sbr.rel (0) target = $region17
    $region16: #{tpu_custom_call.1} parent=1 // pred_region
      _
    $region17: #{tpu_custom_call.1} parent=1 // pred_fallthru
      _
    // Predicated region
    $region18: #{tpu_custom_call.1} parent=1 // pred_check
      _
    $region19: #{tpu_custom_call.1} parent=1 // pred_check_branch
      %49 = sbr.rel (0) target = $region21
    $region20: #{tpu_custom_call.1} parent=1 // pred_region
      _
    $region21: #{tpu_custom_call.1} parent=1 // pred_fallthru
      _
    // Predicated region
    $region22: #{tpu_custom_call.1} parent=1 // pred_check
      _
    $region23: #{tpu_custom_call.1} parent=1 // pred_check_branch
      %51 = sbr.rel (0) target = $region25
    $region24: #{tpu_custom_call.1} parent=1 // pred_region
      _
    $region25: #{tpu_custom_call.1} parent=1 // pred_fallthru
      _
    // Predicated region
    $region26: #{tpu_custom_call.1} parent=1 // pred_check
      _
    $region27: #{tpu_custom_call.1} parent=1 // pred_check_branch
      %53 = sbr.rel (0) target = $region29
    $region28: #{tpu_custom_call.1} parent=1 // pred_region
      _
    $region29: #{tpu_custom_call.1} parent=1 // pred_fallthru
      _
    // Predicated region
    $region30: #{tpu_custom_call.1} parent=1 // pred_check
      _
    $region31: #{tpu_custom_call.1} parent=1 // pred_check_branch
      %55 = sbr.rel (0) target = $region33
    $region32: #{tpu_custom_call.1} parent=1 // pred_region
      _
    $region33: #{tpu_custom_call.1} parent=1 // pred_fallthru
      _
    // Predicated region
    $region34: #{tpu_custom_call.1} parent=1 // pred_check
      _
    $region35: #{tpu_custom_call.1} parent=1 // pred_check_branch
      %57 = sbr.rel (0) target = $region37
    $region36: #{tpu_custom_call.1} parent=1 // pred_region
      _
    $region37: #{tpu_custom_call.1} parent=1 // pred_fallthru
      _
    // Predicated region
    $region38: #{tpu_custom_call.1} parent=1 // pred_check
      _
    $region39: #{tpu_custom_call.1} parent=1 // pred_check_branch
      %59 = sbr.rel (0) target = $region41
    $region40: #{tpu_custom_call.1} parent=1 // pred_region
      %61 = dma.done [#allocation3], 512
    $region41: #{tpu_custom_call.1} parent=1 // pred_fallthru
      _
    // Predicated region
    $region42: #{tpu_custom_call.1} parent=1 // pred_check
      _
    $region43: #{tpu_custom_call.1} parent=1 // pred_check_branch
      %63 = sbr.rel (0) target = $region45
    $region44: #{tpu_custom_call.1} parent=1 // pred_region
      %65 = dma.done [#allocation6], 512
    $region45: #{tpu_custom_call.1} parent=1 // pred_fallthru
      _
    %v66 = vld [vmem:[%s3] sm:$0xff]
    %v67 = vld [vmem:[%s5] sm:$0xff]
    %v68 = vld [vmem:[%s7] sm:$0xff]
    %v69 = vld [vmem:[%s4] sm:$0xff]
    %v70 = vld [vmem:[%s8] ss:$4 sm:$0x3]
    %s71 = scalar_lea.vmem %s8, 1
    %v72 = vld [vmem:[%s71] ss:$4 sm:$0x3]
    %s73 = scalar_lea.vmem %s8, 2
    %v74 = vld [vmem:[%s73] ss:$4 sm:$0x3]
    %s75 = scalar_lea.vmem %s8, 3
    %v76 = vld [vmem:[%s75] ss:$4 sm:$0x3]
    %v77 = vld [vmem:[%s2] sm:$0xff]
    %v78 = vld [vmem:[#allocation5] sm:$0xff]
    %v79 = vld [vmem:[#allocation5 + $0x8] sm:$0xff]
    %81 = vset.pattern.permute.xlu0 0
    %82 = vperm.xlu0 %81, %v66
    %v83 = vpop.permute.xlu0 %82
    %vm85 = vcmask 64512
    %v87 = vsel %vm85, %v77, 0
    %89 = vmatpush.msra.mxu0 0.0
    %90 = vmatpush.msra.mxu0 0.0
    %91 = vmatpush.msra.mxu0 0.0
    %92 = vmatpush.msra.mxu0 0.0
    %93 = vmatpush.msra.mxu0 0.0
    %94 = vmatpush.msra.mxu0 0.0
    %95 = vmatpush.msra.mxu0 0.0
    %96 = vmatpush.msra.mxu0 0.0
    %97 = vmatpush.msra.mxu0 0.0
    %98 = vmatpush.msra.mxu0 0.0
    %99 = vmatpush.msra.mxu0 0.0
    %100 = vmatpush.msra.mxu0 0.0
    %101 = vmatpush.msra.mxu0 0.0
    %102 = vmatpush.msra.mxu0 0.0
    %103 = vmatpush.msra.mxu0 0.0
    %104 = vmatpush.msra.mxu0 %v78
    %105 = vmatmul.f32.gmra.mxu0 %v87
    %v106 = vpop.f32.mrf.mxu0
    %v107 = vadd.f32 %v83, %v106
    %108 = vdwg.mxu0
    %109 = vmatpush.msra.mxu0 0.0
    %110 = vmatpush.msra.mxu0 0.0
    %111 = vmatpush.msra.mxu0 0.0
    %112 = vmatpush.msra.mxu0 0.0
    %113 = vmatpush.msra.mxu0 0.0
    %114 = vmatpush.msra.mxu0 0.0
    %115 = vmatpush.msra.mxu0 0.0
    %116 = vmatpush.msra.mxu0 0.0
    %117 = vmatpush.msra.mxu0 0.0
    %118 = vmatpush.msra.mxu0 0.0
    %119 = vmatpush.msra.mxu0 0.0
    %120 = vmatpush.msra.mxu0 0.0
    %121 = vmatpush.msra.mxu0 0.0
    %122 = vmatpush.msra.mxu0 0.0
    %123 = vmatpush.msra.mxu0 0.0
    %124 = vmatpush.msra.mxu0 %v79
    %125 = vmatmul.f32.gmra.mxu0 %v87
    %v126 = vpop.f32.mrf.mxu0
    %v127 = vadd.f32 %v83, %v126
    %128 = vdwg.mxu0
    %v129 = vmax.f32 %v107, 0.0
    %v130 = vmax.f32 %v127, 0.0
    %131 = vrot.lane.b32.xlu0 %v129, 1
    %v132 = vpop.permute.xlu0 %131
    %133 = vrot.lane.b32.xlu0 %v130, 1
    %v134 = vpop.permute.xlu0 %133
    %v135 = vlaneseq
    %v136 = vand.u32 %v135, 127
    %vm137 = vcmp.lt.s32.totalorder %v136, 1
    %v138 = vsel %vm137, %v132, %v134
    %v139 = vsel %vm137, %v134, %v132
    %v141 = vperm.slane %v70, 0
    %v142 = vperm.slane %v70, 1
    %v145 = vmul.f32 %v139, %v141
    %v146 = vmul.f32 %v138, %v142
    %147 = vrot.lane.b32.xlu0 %v129, 127
    %v148 = vpop.permute.xlu0 %147
    %149 = vrot.lane.b32.xlu0 %v130, 127
    %v150 = vpop.permute.xlu0 %149
    %vm151 = vcmp.lt.s32.totalorder %v136, 127
    %v152 = vsel %vm151, %v148, %v150
    %v153 = vsel %vm151, %v150, %v148
    %v155 = vperm.slane %v72, 0
    %v156 = vperm.slane %v72, 1
    %v159 = vmul.f32 %v152, %v155
    %v160 = vmul.f32 %v153, %v156
    %162 = vset.pattern.permute.xlu0 0
    %163 = vperm.xlu0 %162, %v69
    %v164 = vpop.permute.xlu0 %163
    %v166 = vmul.f32 %v164, %v145
    %v167 = vmul.f32 %v164, %v146
    %168 = vset.pattern.permute.xlu0 1
    %169 = vperm.xlu0 %168, %v69
    %v170 = vpop.permute.xlu0 %169
    %v172 = vmul.f32 %v170, %v129
    %v173 = vmul.f32 %v170, %v130
    %v174 = vadd.f32 %v166, %v172
    %v175 = vadd.f32 %v167, %v173
    %176 = vset.pattern.permute.xlu0 2
    %177 = vperm.xlu0 %176, %v69
    %v178 = vpop.permute.xlu0 %177
    %v180 = vmul.f32 %v178, %v159
    %v181 = vmul.f32 %v178, %v160
    %v182 = vadd.f32 %v174, %v180
    %v183 = vadd.f32 %v175, %v181
    %184 = vset.pattern.permute.xlu0 3
    %185 = vperm.xlu0 %184, %v69
    %v186 = vpop.permute.xlu0 %185
    %v188 = vmul.f32 %v186, %v145
    %v189 = vmul.f32 %v186, %v146
    %190 = vset.pattern.permute.xlu0 4
    %191 = vperm.xlu0 %190, %v69
    %v192 = vpop.permute.xlu0 %191
    %v194 = vmul.f32 %v192, %v129
    %v195 = vmul.f32 %v192, %v130
    %v196 = vadd.f32 %v188, %v194
    %v197 = vadd.f32 %v189, %v195
    %198 = vset.pattern.permute.xlu0 5
    %199 = vperm.xlu0 %198, %v69
    %v200 = vpop.permute.xlu0 %199
    %v202 = vmul.f32 %v200, %v159
    %v203 = vmul.f32 %v200, %v160
    %v204 = vadd.f32 %v196, %v202
    %v205 = vadd.f32 %v197, %v203
    %206 = vset.pattern.permute.xlu0 6
    %207 = vperm.xlu0 %206, %v69
    %v208 = vpop.permute.xlu0 %207
    %v210 = vmul.f32 %v208, %v145
    %v211 = vmul.f32 %v208, %v146
    %212 = vset.pattern.permute.xlu0 7
    %213 = vperm.xlu0 %212, %v69
    %v214 = vpop.permute.xlu0 %213
    %v216 = vmul.f32 %v214, %v129
    %v217 = vmul.f32 %v214, %v130
    %v218 = vadd.f32 %v210, %v216
    %v219 = vadd.f32 %v211, %v217
    %220 = vset.pattern.permute.xlu0 8
    %221 = vperm.xlu0 %220, %v69
    %v222 = vpop.permute.xlu0 %221
    %v224 = vmul.f32 %v222, %v159
    %v225 = vmul.f32 %v222, %v160
    %v226 = vadd.f32 %v218, %v224
    %v227 = vadd.f32 %v219, %v225
    %228 = vrot.lane.b32.xlu0 %v182, 16
    %v229 = vpop.permute.xlu0 %228
    %230 = vrot.lane.b32.xlu0 %v183, 16
    %v231 = vpop.permute.xlu0 %230
    %vm232 = vcmp.lt.s32.totalorder %v136, 16
    %v233 = vsel %vm232, %v229, %v231
    %v234 = vsel %vm232, %v231, %v229
    %v236 = vperm.slane %v74, 0
    %v237 = vperm.slane %v74, 1
    %v240 = vmul.f32 %v234, %v236
    %v241 = vmul.f32 %v233, %v237
    %v242 = vadd.f32 %v204, %v240
    %v243 = vadd.f32 %v205, %v241
    %244 = vrot.lane.b32.xlu0 %v226, 112
    %v245 = vpop.permute.xlu0 %244
    %246 = vrot.lane.b32.xlu0 %v227, 112
    %v247 = vpop.permute.xlu0 %246
    %vm248 = vcmp.lt.s32.totalorder %v136, 112
    %v249 = vsel %vm248, %v245, %v247
    %v250 = vsel %vm248, %v247, %v245
    %v252 = vperm.slane %v76, 0
    %v253 = vperm.slane %v76, 1
    %v256 = vmul.f32 %v249, %v252
    %v257 = vmul.f32 %v250, %v253
    %v258 = vadd.f32 %v242, %v256
    %v259 = vadd.f32 %v243, %v257
    %261 = vset.pattern.permute.xlu0 0
    %262 = vperm.xlu0 %261, %v67
    %v263 = vpop.permute.xlu0 %262
    %v265 = vadd.f32 %v258, %v263
    %v266 = vadd.f32 %v259, %v263
    %v267 = vld [vmem:[%s6] sm:$0xff]
    %269 = vset.pattern.permute.xlu0 0
    %270 = vperm.xlu0 %269, %v68
    %v271 = vpop.permute.xlu0 %270
    %v274 = vsel %vm85, %v267, 0
    %276 = vmatpush.msra.mxu0 0.0
    %277 = vmatpush.msra.mxu0 0.0
    %278 = vmatpush.msra.mxu0 0.0
    %279 = vmatpush.msra.mxu0 0.0
    %280 = vmatpush.msra.mxu0 0.0
    %281 = vmatpush.msra.mxu0 0.0
    %282 = vmatpush.msra.mxu0 0.0
    %283 = vmatpush.msra.mxu0 0.0
    %284 = vmatpush.msra.mxu0 0.0
    %285 = vmatpush.msra.mxu0 0.0
    %286 = vmatpush.msra.mxu0 0.0
    %287 = vmatpush.msra.mxu0 0.0
    %288 = vmatpush.msra.mxu0 0.0
    %289 = vmatpush.msra.mxu0 0.0
    %290 = vmatpush.msra.mxu0 0.0
    %291 = vmatpush.msra.mxu0 %v265
    %292 = vmatmul.f32.gmra.mxu0 %v274
    %v293 = vpop.f32.mrf.mxu0
    %v294 = vadd.f32 %v271, %v293
    %295 = vdwg.mxu0
    %296 = vmatpush.msra.mxu0 0.0
    %297 = vmatpush.msra.mxu0 0.0
    %298 = vmatpush.msra.mxu0 0.0
    %299 = vmatpush.msra.mxu0 0.0
    %300 = vmatpush.msra.mxu0 0.0
    %301 = vmatpush.msra.mxu0 0.0
    %302 = vmatpush.msra.mxu0 0.0
    %303 = vmatpush.msra.mxu0 0.0
    %304 = vmatpush.msra.mxu0 0.0
    %305 = vmatpush.msra.mxu0 0.0
    %306 = vmatpush.msra.mxu0 0.0
    %307 = vmatpush.msra.mxu0 0.0
    %308 = vmatpush.msra.mxu0 0.0
    %309 = vmatpush.msra.mxu0 0.0
    %310 = vmatpush.msra.mxu0 0.0
    %311 = vmatpush.msra.mxu0 %v266
    %312 = vmatmul.f32.gmra.mxu0 %v274
    %v313 = vpop.f32.mrf.mxu0
    %v314 = vadd.f32 %v271, %v313
    %315 = vdwg.mxu0
    %v316 = vmax.f32 %v294, 0.0
    %v317 = vmax.f32 %v314, 0.0
    %v318 = vld [vmem:[#allocation2] sm:$0xff]
    %v319 = vld [vmem:[#allocation2 + $0x8] sm:$0xff]
    %320 = vst [vmem:[#allocation7] sm:$0xff] %v318
    %321 = vst [vmem:[#allocation7 + $0x8] sm:$0xff] %v319
    %322 = vst [vmem:[#allocation7 + $0x10] sm:$0xff] %v316
    %323 = vst [vmem:[#allocation7 + $0x18] sm:$0xff] %v317
    %v324 = vld [vmem:[%s2] sm:$0xff]
    %s325 = scalar_lea.vmem [#allocation5], 16
    %v326 = vld [vmem:[%s325] sm:$0xff]
    %v327 = vld [vmem:[%s325 + $0x8] sm:$0xff]
    %v329 = vsel %vm85, %v324, 0
    %331 = vmatpush.msra.mxu0 0.0
    %332 = vmatpush.msra.mxu0 0.0
    %333 = vmatpush.msra.mxu0 0.0
    %334 = vmatpush.msra.mxu0 0.0
    %335 = vmatpush.msra.mxu0 0.0
    %336 = vmatpush.msra.mxu0 0.0
    %337 = vmatpush.msra.mxu0 0.0
    %338 = vmatpush.msra.mxu0 0.0
    %339 = vmatpush.msra.mxu0 0.0
    %340 = vmatpush.msra.mxu0 0.0
    %341 = vmatpush.msra.mxu0 0.0
    %342 = vmatpush.msra.mxu0 0.0
    %343 = vmatpush.msra.mxu0 0.0
    %344 = vmatpush.msra.mxu0 0.0
    %345 = vmatpush.msra.mxu0 0.0
    %346 = vmatpush.msra.mxu0 %v326
    %347 = vmatmul.f32.gmra.mxu0 %v329
    %v348 = vpop.f32.mrf.mxu0
    %v349 = vadd.f32 %v83, %v348
    %350 = vdwg.mxu0
    %351 = vmatpush.msra.mxu0 0.0
    %352 = vmatpush.msra.mxu0 0.0
    %353 = vmatpush.msra.mxu0 0.0
    %354 = vmatpush.msra.mxu0 0.0
    %355 = vmatpush.msra.mxu0 0.0
    %356 = vmatpush.msra.mxu0 0.0
    %357 = vmatpush.msra.mxu0 0.0
    %358 = vmatpush.msra.mxu0 0.0
    %359 = vmatpush.msra.mxu0 0.0
    %360 = vmatpush.msra.mxu0 0.0
    %361 = vmatpush.msra.mxu0 0.0
    %362 = vmatpush.msra.mxu0 0.0
    %363 = vmatpush.msra.mxu0 0.0
    %364 = vmatpush.msra.mxu0 0.0
    %365 = vmatpush.msra.mxu0 0.0
    %366 = vmatpush.msra.mxu0 %v327
    %367 = vmatmul.f32.gmra.mxu0 %v329
    %v368 = vpop.f32.mrf.mxu0
    %v369 = vadd.f32 %v83, %v368
    %370 = vdwg.mxu0
    %v371 = vmax.f32 %v349, 0.0
    %v372 = vmax.f32 %v369, 0.0
    %373 = vrot.lane.b32.xlu0 %v371, 1
    %v374 = vpop.permute.xlu0 %373
    %375 = vrot.lane.b32.xlu0 %v372, 1
    %v376 = vpop.permute.xlu0 %375
    %v377 = vsel %vm137, %v374, %v376
    %v378 = vsel %vm137, %v376, %v374
    %v379 = vmul.f32 %v378, %v141
    %v380 = vmul.f32 %v377, %v142
    %381 = vrot.lane.b32.xlu0 %v371, 127
    %v382 = vpop.permute.xlu0 %381
    %383 = vrot.lane.b32.xlu0 %v372, 127
    %v384 = vpop.permute.xlu0 %383
    %v385 = vsel %vm151, %v382, %v384
    %v386 = vsel %vm151, %v384, %v382
    %v387 = vmul.f32 %v385, %v155
    %v388 = vmul.f32 %v386, %v156
    %v389 = vmul.f32 %v164, %v379
    %v390 = vmul.f32 %v164, %v380
    %v391 = vmul.f32 %v170, %v371
    %v392 = vmul.f32 %v170, %v372
    %v393 = vadd.f32 %v389, %v391
    %v394 = vadd.f32 %v390, %v392
    %v395 = vmul.f32 %v178, %v387
    %v396 = vmul.f32 %v178, %v388
    %v397 = vadd.f32 %v393, %v395
    %v398 = vadd.f32 %v394, %v396
    %v399 = vmul.f32 %v186, %v379
    %v400 = vmul.f32 %v186, %v380
    %v401 = vmul.f32 %v192, %v371
    %v402 = vmul.f32 %v192, %v372
    %v403 = vadd.f32 %v399, %v401
    %v404 = vadd.f32 %v400, %v402
    %v405 = vmul.f32 %v200, %v387
    %v406 = vmul.f32 %v200, %v388
    %v407 = vadd.f32 %v403, %v405
    %v408 = vadd.f32 %v404, %v406
    %v409 = vmul.f32 %v208, %v379
    %v410 = vmul.f32 %v208, %v380
    %v411 = vmul.f32 %v214, %v371
    %v412 = vmul.f32 %v214, %v372
    %v413 = vadd.f32 %v409, %v411
    %v414 = vadd.f32 %v410, %v412
    %v415 = vmul.f32 %v222, %v387
    %v416 = vmul.f32 %v222, %v388
    %v417 = vadd.f32 %v413, %v415
    %v418 = vadd.f32 %v414, %v416
    %419 = vrot.lane.b32.xlu0 %v397, 16
    %v420 = vpop.permute.xlu0 %419
    %421 = vrot.lane.b32.xlu0 %v398, 16
    %v422 = vpop.permute.xlu0 %421
    %v423 = vsel %vm232, %v420, %v422
    %v424 = vsel %vm232, %v422, %v420
    %v425 = vmul.f32 %v424, %v236
    %v426 = vmul.f32 %v423, %v237
    %v427 = vadd.f32 %v407, %v425
    %v428 = vadd.f32 %v408, %v426
    %429 = vrot.lane.b32.xlu0 %v417, 112
    %v430 = vpop.permute.xlu0 %429
    %431 = vrot.lane.b32.xlu0 %v418, 112
    %v432 = vpop.permute.xlu0 %431
    %v433 = vsel %vm248, %v430, %v432
    %v434 = vsel %vm248, %v432, %v430
    %v435 = vmul.f32 %v433, %v252
    %v436 = vmul.f32 %v434, %v253
    %v437 = vadd.f32 %v427, %v435
    %v438 = vadd.f32 %v428, %v436
    %v439 = vadd.f32 %v437, %v263
    %v440 = vadd.f32 %v438, %v263
    %v441 = vld [vmem:[%s6] sm:$0xff]
    %v443 = vsel %vm85, %v441, 0
    %445 = vmatpush.msra.mxu0 0.0
    %446 = vmatpush.msra.mxu0 0.0
    %447 = vmatpush.msra.mxu0 0.0
    %448 = vmatpush.msra.mxu0 0.0
    %449 = vmatpush.msra.mxu0 0.0
    %450 = vmatpush.msra.mxu0 0.0
    %451 = vmatpush.msra.mxu0 0.0
    %452 = vmatpush.msra.mxu0 0.0
    %453 = vmatpush.msra.mxu0 0.0
    %454 = vmatpush.msra.mxu0 0.0
    %455 = vmatpush.msra.mxu0 0.0
    %456 = vmatpush.msra.mxu0 0.0
    %457 = vmatpush.msra.mxu0 0.0
    %458 = vmatpush.msra.mxu0 0.0
    %459 = vmatpush.msra.mxu0 0.0
    %460 = vmatpush.msra.mxu0 %v439
    %461 = vmatmul.f32.gmra.mxu0 %v443
    %v462 = vpop.f32.mrf.mxu0
    %v463 = vadd.f32 %v271, %v462
    %464 = vdwg.mxu0
    %465 = vmatpush.msra.mxu0 0.0
    %466 = vmatpush.msra.mxu0 0.0
    %467 = vmatpush.msra.mxu0 0.0
    %468 = vmatpush.msra.mxu0 0.0
    %469 = vmatpush.msra.mxu0 0.0
    %470 = vmatpush.msra.mxu0 0.0
    %471 = vmatpush.msra.mxu0 0.0
    %472 = vmatpush.msra.mxu0 0.0
    %473 = vmatpush.msra.mxu0 0.0
    %474 = vmatpush.msra.mxu0 0.0
    %475 = vmatpush.msra.mxu0 0.0
    %476 = vmatpush.msra.mxu0 0.0
    %477 = vmatpush.msra.mxu0 0.0
    %478 = vmatpush.msra.mxu0 0.0
    %479 = vmatpush.msra.mxu0 0.0
    %480 = vmatpush.msra.mxu0 %v440
    %481 = vmatmul.f32.gmra.mxu0 %v443
    %v482 = vpop.f32.mrf.mxu0
    %v483 = vadd.f32 %v271, %v482
    %484 = vdwg.mxu0
    %v485 = vmax.f32 %v463, 0.0
    %v486 = vmax.f32 %v483, 0.0
    %s487 = scalar_lea.vmem [#allocation2], 16
    %v488 = vld [vmem:[%s487] sm:$0xff]
    %v489 = vld [vmem:[%s487 + $0x8] sm:$0xff]
    %s490 = scalar_lea.vmem [#allocation7], 32
    %491 = vst [vmem:[%s490] sm:$0xff] %v488
    %492 = vst [vmem:[%s490 + $0x8] sm:$0xff] %v489
    %493 = vst [vmem:[%s490 + $0x10] sm:$0xff] %v485
    %494 = vst [vmem:[%s490 + $0x18] sm:$0xff] %v486
    // Predicated region
    $region46: #{tpu_custom_call.1} parent=1 // pred_check
      _
    $region47: #{tpu_custom_call.1} parent=1 // pred_check_branch
      %496 = sbr.rel (0) target = $region49
    $region48: #{tpu_custom_call.1} parent=1 // pred_region
      %498 = vsyncadd [#allocation4], 0
      %s499 = sshll.u32 [#allocation7], 4
      %s500 = int_to_ptr.vmem [resolvable:$true] %s499
      %s501 = sshll.u32 %s9, 4
      %s502 = int_to_ptr.hbm [resolvable:$true] %s501
      %507 = dma.vmem_to_hbm [thread:$0]  %s500, 1024, %s502, [#allocation4], 512, 512, 32
    $region49: #{tpu_custom_call.1} parent=1 // pred_fallthru
      _
    // Predicated region
    $region50: #{tpu_custom_call.1} parent=1 // pred_check
      _
    $region51: #{tpu_custom_call.1} parent=1 // pred_check_branch
      %509 = sbr.rel (0) target = $region53
    $region52: #{tpu_custom_call.1} parent=1 // pred_region
      %511 = dma.done [#allocation4], 1024
    $region53: #{tpu_custom_call.1} parent=1 // pred_fallthru
      _
    %512 = vsyncpa [#allocation3], 1
    %513 = vsyncpa [#allocation6], 1
    %514 = vsyncpa [#allocation4], 1

</llo_original>
